<compile_context>
chip_gen: v7x
topology: tpu7x:2x2x1
jax: 0.10.0
libtpu: 0.0.40
codegen_flags: <defaults>
</compile_context>

<pallas_src>
import functools

import jax
import jax.numpy as jnp
from jax import lax
from jax.experimental import pallas as pl
from jax.experimental.pallas import tpu as pltpu


def _layernorm_cf_kernel(x_ref, g_ref, b_ref, o_ref, *, eps):
    """LayerNorm over the channel (sublane) axis of a (Bb, C, tile_T) block."""
    x = x_ref[...].astype(jnp.float32)                    # (Bb, C, tile)
    # Single-pass statistics (one traversal of x, fewer live f32 temporaries).
    mean = jnp.mean(x, axis=1, keepdims=True)             # (Bb, 1, tile)
    mean_sq = jnp.mean(x * x, axis=1, keepdims=True)
    var = jnp.maximum(mean_sq - mean * mean, 0.0)         # biased var (F.layer_norm)
    inv = lax.rsqrt(var + eps)                            # EUP
    xhat = (x - mean) * inv
    # g_ref/b_ref: (C, 1) f32, broadcast along the lane (T) axis.
    o_ref[...] = (xhat * g_ref[...] + b_ref[...]).astype(o_ref.dtype)


def _round_up(n, m):
    return -(-n // m) * m


def _vmem_capacity_bytes():
    """Physical per-core VMEM (128 MiB on v5e/v6e, 64 MiB on v7x)."""
    try:
        return int(pltpu.get_tpu_info().vmem_capacity_bytes)
    except Exception:  # interpret mode / older jax / CPU tracing fallback
        return 128 << 20


def layer_norm_module(x, gamma, beta, *, eps=1e-5, tile_t=None, block_b=None):
    """Matches the PyTorch LayerNorm module: x is (B, C, T), normalize over C.

    Works directly on the channels-first layout (no transposes, no padding);
    I/O stays in the caller's dtype, accumulation is in f32.
    """
    B, C, T = x.shape
    itemsize = jnp.dtype(x.dtype).itemsize

    cap = _vmem_capacity_bytes()
    budget = int(cap * 0.65)      # working-set budget for tile sizing
    headroom = 4 << 20
    # Per-step working-set model per (batch row, lane column):
    #   2x double-buffered native in + 2x out, plus ~3 full-block f32 temps.
    bytes_per_col = C * (4 * itemsize + 3 * 4)

    t_full = _round_up(T, 128)

    # --- lane tile over T ---------------------------------------------------
    if tile_t is None:
        # Target ~2 MiB of native input per step to amortize grid-step overhead.
        target_native = 2 << 20
        tile_t = _round_up(max(1, target_native // max(1, C * itemsize)), 128)
    assert tile_t % 128 == 0, "tile_t must be a multiple of 128"
    min_tile = 512 if itemsize <= 2 else 256   # keep strided DMA rows >= ~1 KiB
    tile = max(min(tile_t, t_full), min(min_tile, t_full), 128)
    # Cap so the (block_b=1) working set fits the per-generation VMEM budget.
    max_tile = max(128, ((budget - headroom) // max(1, bytes_per_col)) // 128 * 128)
    tile = min(tile, max_tile)

    # --- batch rows per step --------------------------------------------------
    if block_b is None:
        blk_native = C * tile * itemsize
        if B > 1 and tile >= t_full and blk_native < (1 << 20):
            want = -(-(1 << 20) // max(1, blk_native))                   # reach ~1 MiB/step
            fit = max(1, (budget - headroom) // max(1, tile * bytes_per_col))
            block_b = int(min(B, want, fit))
        else:
            block_b = 1
    block_b = int(max(1, min(block_b, B)))

    num_t = pl.cdiv(T, tile)
    num_b = pl.cdiv(B, block_b)

    # v7x megacore: avoid a single-step grid when the work is splittable so both
    # TensorCores get a share (both grid axes are fully parallel).
    if num_b * num_t == 1:
        if t_full >= 256:
            tile = _round_up(t_full // 2, 128)
            num_t = pl.cdiv(T, tile)
        elif block_b > 1:
            block_b = -(-block_b // 2)
            num_b = pl.cdiv(B, block_b)

    # Pre-cast params once (constant-index blocks).
    g2 = gamma.reshape(C, 1).astype(jnp.float32)
    b2 = beta.reshape(C, 1).astype(jnp.float32)

    blk_native = block_b * C * tile * itemsize
    blk_f32 = block_b * C * tile * 4
    vmem_limit = 4 * blk_native + 4 * blk_f32 + (4 << 20)
    vmem_limit = int(min(max(vmem_limit, 16 << 20), int(cap * 0.85)))

    kernel = functools.partial(_layernorm_cf_kernel, eps=eps)
    return pl.pallas_call(
        kernel,
        out_shape=jax.ShapeDtypeStruct((B, C, T), x.dtype),
        grid_spec=pl.GridSpec(
            grid=(num_b, num_t),
            in_specs=[
                pl.BlockSpec((block_b, C, tile), lambda b, t: (b, 0, t)),
                pl.BlockSpec((C, 1), lambda b, t: (0, 0)),
                pl.BlockSpec((C, 1), lambda b, t: (0, 0)),
            ],
            out_specs=pl.BlockSpec((block_b, C, tile), lambda b, t: (b, 0, t)),
        ),
        compiler_params=pltpu.CompilerParams(
            dimension_semantics=("parallel", "parallel"),
            vmem_limit_bytes=vmem_limit,
        ),
    )(x, g2, b2)


if __name__ == "__main__":
    def ref_layer_norm(x, gamma, beta, eps=1e-5):
        x_last = jnp.transpose(x, (0, 2, 1)).astype(jnp.float32)
        mean = jnp.mean(x_last, axis=-1, keepdims=True)
        var = jnp.mean((x_last - mean) ** 2, axis=-1, keepdims=True)
        y = (x_last - mean) / jnp.sqrt(var + eps) * gamma + beta
        return jnp.transpose(y, (0, 2, 1)).astype(x.dtype)

    key = jax.random.PRNGKey(0)

    # Case 1: small shape matching the module's forward: (B, C, T), norm over C.
    B, C, T = 2, 32, 16
    k1, k2 = jax.random.split(key)
    x = jax.random.normal(k1, (B, C, T), dtype=jnp.float32)
    gamma = jnp.ones((C,), dtype=jnp.float32)   # module init: ones / zeros
    beta = jnp.zeros((C,), dtype=jnp.float32)
    y = jax.block_until_ready(layer_norm_module(x, gamma, beta, eps=1e-5))
    ref = ref_layer_norm(x, gamma, beta, 1e-5)
    assert jnp.max(jnp.abs(y - ref)) < 1e-4, "mismatch vs reference (case 1)"

    # Case 2: T not a multiple of 128 + non-trivial gamma/beta -> exercises the
    # ragged last T-block (no pad / no slice) and a multi-step grid.
    B2, C2, T2 = 2, 64, 300
    k3, k4, k5 = jax.random.split(k2, 3)
    x2 = jax.random.normal(k3, (B2, C2, T2), dtype=jnp.float32)
    g = jax.random.normal(k4, (C2,), dtype=jnp.float32)
    b = jax.random.normal(k5, (C2,), dtype=jnp.float32)
    y2 = jax.block_until_ready(layer_norm_module(x2, g, b, eps=1e-5))
    ref2 = ref_layer_norm(x2, g, b, 1e-5)
    assert jnp.max(jnp.abs(y2 - ref2)) < 1e-4, "mismatch vs reference (case 2)"

    # Case 3: ragged batch block (B=3 with block_b=2) AND ragged T block.
    B3, C3, T3 = 3, 48, 200
    k6, k7, k8 = jax.random.split(k5, 3)
    x3 = jax.random.normal(k6, (B3, C3, T3), dtype=jnp.float32)
    g3 = jax.random.normal(k7, (C3,), dtype=jnp.float32)
    b3 = jax.random.normal(k8, (C3,), dtype=jnp.float32)
    y3 = jax.block_until_ready(layer_norm_module(x3, g3, b3, eps=1e-5, block_b=2))
    ref3 = ref_layer_norm(x3, g3, b3, 1e-5)
    assert jnp.max(jnp.abs(y3 - ref3)) < 1e-4, "mismatch vs reference (case 3)"

    # Case 4: bf16 I/O with f32 accumulation.
    B4, C4, T4 = 2, 64, 640
    k9, k10 = jax.random.split(k8)
    x4 = jax.random.normal(k9, (B4, C4, T4), dtype=jnp.bfloat16)
    g4 = (jnp.ones((C4,), jnp.float32) + 0.1 * jax.random.normal(k10, (C4,), jnp.float32))
    b4 = jnp.zeros((C4,), dtype=jnp.float32)
    y4 = jax.block_until_ready(layer_norm_module(x4, g4, b4, eps=1e-5))
    ref4 = ref_layer_norm(x4, g4, b4, 1e-5)
    err4 = jnp.max(jnp.abs(y4.astype(jnp.float32) - ref4.astype(jnp.float32)))
    assert err4 < 6e-2, "mismatch vs reference (case 4, bf16)"

    print("KERNEL_OK")
</pallas_src>

<mosaic_0001>
module attributes {stable_mosaic.version = 11 : i64} {
  func.func @_layernorm_cf_kernel(%arg0: i32, %arg1: i32, %arg2: memref<1x32x128xf32, #tpu.memory_space<vmem>>, %arg3: memref<32x1xf32, #tpu.memory_space<vmem>>, %arg4: memref<32x1xf32, #tpu.memory_space<vmem>>, %arg5: memref<1x32x128xf32, #tpu.memory_space<vmem>>) attributes {dimension_semantics = [#tpu.dimension_semantics<parallel>, #tpu.dimension_semantics<parallel>], iteration_bounds = array<i64: 2, 1>, scalar_prefetch = 0 : i64, scratch_operands = 0 : i64, tpu.core_type = #tpu.core_type<tc>, window_params = [{transform_indices = @transform_0, window_bounds = array<i64: 1, 32, 128>}, {pipeline_mode = #tpu.pipeline_mode<synchronous>, transform_indices = @transform_1, window_bounds = array<i64: 32, 1>}, {pipeline_mode = #tpu.pipeline_mode<synchronous>, transform_indices = @transform_2, window_bounds = array<i64: 32, 1>}, {transform_indices = @transform_3, window_bounds = array<i64: 1, 32, 128>}]} {
    %c0 = arith.constant 0 : index
    %c0_0 = arith.constant 0 : index
    %c0_1 = arith.constant 0 : index
    %0 = vector.load %arg2[%c0, %c0_0, %c0_1] : memref<1x32x128xf32, #tpu.memory_space<vmem>>, vector<1x32x128xf32>
    %cst = arith.constant dense<0.000000e+00> : vector<1x128xf32>
    %1 = vector.multi_reduction <add>, %0, %cst [1] : vector<1x32x128xf32> to vector<1x128xf32>
    %2 = vector.shape_cast %1 : vector<1x128xf32> to vector<1x1x128xf32>
    %cst_2 = arith.constant 3.200000e+01 : f32
    %3 = vector.broadcast %cst_2 : f32 to vector<1x1x128xf32>
    %4 = arith.divf %2, %3 : vector<1x1x128xf32>
    %5 = arith.mulf %0, %0 : vector<1x32x128xf32>
    %cst_3 = arith.constant dense<0.000000e+00> : vector<1x128xf32>
    %6 = vector.multi_reduction <add>, %5, %cst_3 [1] : vector<1x32x128xf32> to vector<1x128xf32>
    %7 = vector.shape_cast %6 : vector<1x128xf32> to vector<1x1x128xf32>
    %cst_4 = arith.constant 3.200000e+01 : f32
    %8 = vector.broadcast %cst_4 : f32 to vector<1x1x128xf32>
    %9 = arith.divf %7, %8 : vector<1x1x128xf32>
    %10 = arith.mulf %4, %4 : vector<1x1x128xf32>
    %11 = arith.subf %9, %10 : vector<1x1x128xf32>
    %cst_5 = arith.constant 0.000000e+00 : f32
    %12 = vector.broadcast %cst_5 : f32 to vector<1x1x128xf32>
    %13 = arith.maximumf %11, %12 : vector<1x1x128xf32>
    %cst_6 = arith.constant 9.99999974E-6 : f32
    %14 = vector.broadcast %cst_6 : f32 to vector<1x1x128xf32>
    %15 = arith.addf %13, %14 : vector<1x1x128xf32>
    %16 = math.rsqrt %15 : vector<1x1x128xf32>
    %17 = vector.broadcast %4 : vector<1x1x128xf32> to vector<1x32x128xf32>
    %18 = arith.subf %0, %17 : vector<1x32x128xf32>
    %19 = vector.broadcast %16 : vector<1x1x128xf32> to vector<1x32x128xf32>
    %20 = arith.mulf %18, %19 : vector<1x32x128xf32>
    %c0_7 = arith.constant 0 : index
    %c0_8 = arith.constant 0 : index
    %21 = vector.load %arg3[%c0_7, %c0_8] : memref<32x1xf32, #tpu.memory_space<vmem>>, vector<32x1xf32>
    %22 = vector.shape_cast %21 : vector<32x1xf32> to vector<1x32x1xf32>
    %23 = vector.broadcast %22 : vector<1x32x1xf32> to vector<1x32x128xf32>
    %24 = arith.mulf %20, %23 : vector<1x32x128xf32>
    %c0_9 = arith.constant 0 : index
    %c0_10 = arith.constant 0 : index
    %25 = vector.load %arg4[%c0_9, %c0_10] : memref<32x1xf32, #tpu.memory_space<vmem>>, vector<32x1xf32>
    %26 = vector.shape_cast %25 : vector<32x1xf32> to vector<1x32x1xf32>
    %27 = vector.broadcast %26 : vector<1x32x1xf32> to vector<1x32x128xf32>
    %28 = arith.addf %24, %27 : vector<1x32x128xf32>
    %c0_11 = arith.constant 0 : index
    %c0_12 = arith.constant 0 : index
    %c0_13 = arith.constant 0 : index
    %29 = vector.load %arg5[%c0_11, %c0_12, %c0_13] : memref<1x32x128xf32, #tpu.memory_space<vmem>>, vector<1x32x128xf32>
    tpu.vector_store %arg5[%c0_11, %c0_12, %c0_13], %28 {strides = array<i32>} : memref<1x32x128xf32, #tpu.memory_space<vmem>>, vector<1x32x128xf32>,
    return
  }
  func.func @transform_0(%arg0: i32, %arg1: i32) -> (i32, i32, i32) {
    %c0_i32 = arith.constant 0 : i32
    %c0_i32_0 = arith.constant 0 : i32
    return %arg0, %c0_i32, %arg1 : i32, i32, i32
  }
  func.func @transform_1(%arg0: i32, %arg1: i32) -> (i32, i32) {
    %c0_i32 = arith.constant 0 : i32
    %c0_i32_0 = arith.constant 0 : i32
    %c0_i32_1 = arith.constant 0 : i32
    return %c0_i32, %c0_i32_0 : i32, i32
  }
  func.func @transform_2(%arg0: i32, %arg1: i32) -> (i32, i32) {
    %c0_i32 = arith.constant 0 : i32
    %c0_i32_0 = arith.constant 0 : i32
    %c0_i32_1 = arith.constant 0 : i32
    return %c0_i32, %c0_i32_0 : i32, i32
  }
  func.func @transform_3(%arg0: i32, %arg1: i32) -> (i32, i32, i32) {
    %c0_i32 = arith.constant 0 : i32
    %c0_i32_0 = arith.constant 0 : i32
    return %arg0, %c0_i32, %arg1 : i32, i32, i32
  }
}

</mosaic_0001>

<llo_original>
// kernel: tpu_custom_call.1
$region0: #{tpu_custom_call.1}
  #allocation0 [shape = 'u32[]', space=smem, size = 0x4, offset = 0x4, fixed_abs, tag = 'smem constant byte address 0x4 - core index']
  #allocation1 [shape = 'u32[144,128]{1,0:T(1,128)}', space=vmem, size = 0x12000, scoped, tag = 'internal scratch']
  %s0 = inlined_call_operand.vmem [shape: f32[2,32,16], index: 0, kind: input, shape index: {}]
  %s1 = inlined_call_operand.vmem [shape: f32[32,1], index: 1, kind: input, shape index: {}]
  %s2 = inlined_call_operand.vmem [shape: f32[32,1], index: 2, kind: input, shape index: {}]
  %s3 = inlined_call_operand.vmem [shape: f32[2,32,16], index: 3, kind: output, shape index: {}]
  %s4 = sld [smem:[#allocation0]]
  $region45: #{tpu_custom_call.1} parent=0
    _
  %s6 = ssub.s32 1, %s4
  %s7 = scalar_select 0, %s6, %s4
  loop: start=0, step=1, limit=4
  $region2: #{tpu_custom_call.1} parent=0 // loop_pre_header
    _
  $region3: #{tpu_custom_call.1} parent=0 // loop_header
    %s9 = sphi 0, %s13
    %p10 = scmp.ge.s32.totalorder %s9, 4
    %s16 = sphi 0, %s28
    %s17 = sphi 0, %s24
    %s18 = sphi 0, %s16
    %s19 = sphi 0, %s17
    %s20 = sphi 0, %s18
    %s21 = sphi 0, %s19
    %s33 = sphi 0, %s35
    %s36 = sphi 0, %s33
    %s37 = sphi 0, %s36
    %s53 = sphi 0, %s37
    %s57 = sphi 0, %s57
    %s59 = sphi 0, %s57
    %s60 = sphi 0, %s59
    %s74 = sphi 0, %s60
    %s78 = sphi 0, %s78
    %s80 = sphi 0, %s78
    %s81 = sphi 0, %s80
    %s95 = sphi 0, %s81
    %s103 = sphi 0, %s105
    %s106 = sphi 0, %s103
    %s107 = sphi 0, %s106
    %s123 = sphi 0, %s107
  $region4: #{tpu_custom_call.1} parent=0 // loop_header_branch
    %12 = sbr.rel (%p10) target = $region8
  $region5: #{tpu_custom_call.1} parent=0 // loop_body
    %s14 = ssub.s32 %s9, 1
    %s15 = ssub.s32 %s9, 2
    %s22 = sadd.s32 1, %s17
    %p23 = scmp.ge.s32.totalorder %s22, 1
    %s24 = scalar_select %p23, 0, %s22
    %s25 = sadd.s32 1, %s16
    %s26 = scalar_select %p23, %s25, %s16
    %p27 = scmp.ge.s32.totalorder %s26, 2
    %s28 = scalar_select %p27, 0, %s26
    %s29 = ssub.s32 %s16, %s28
    %s30 = ssub.s32 %s17, %s24
    %s31 = sor.u32 %s29, %s30
    %p32 = scmp.eq.s32.totalorder %s31, 0
    %s34 = sadd.s32 %s33, 1
    %s35 = scalar_select %p32, %s33, %s34
    %p38 = pneg %p32
    %p39 = scmp.eq.s32.totalorder %s9, 1
    %p40 = por %p38, %p39
    %p41 = scmp.ne.s32.totalorder %s33, %s36
    %p42 = scmp.eq.s32.totalorder %s9, 0
    %p43 = por %p41, %p42
    %p44 = scmp.ne.s32.totalorder %s33, %s36
    %p45 = scmp.eq.s32.totalorder %s14, 1
    %p46 = por %p44, %p45
    %p47 = scmp.ne.s32.totalorder %s36, %s37
    %p48 = scmp.eq.s32.totalorder %s14, 0
    %p49 = por %p47, %p48
    %p50 = scmp.ne.s32.totalorder %s36, %s37
    %p51 = scmp.eq.s32.totalorder %s15, 1
    %p52 = por %p50, %p51
    %p54 = scmp.ne.s32.totalorder %s37, %s53
    %p55 = scmp.eq.s32.totalorder %s15, 0
    %p56 = por %p54, %p55
    %s58 = sadd.s32 %s57, 1
    %p61 = scmp.eq.s32.totalorder %s9, 1
    %p62 = scmp.ne.s32.totalorder %s57, %s59
    %p63 = scmp.eq.s32.totalorder %s9, 0
    %p64 = por %p62, %p63
    %p65 = scmp.ne.s32.totalorder %s57, %s59
    %p66 = scmp.eq.s32.totalorder %s14, 1
    %p67 = por %p65, %p66
    %p68 = scmp.ne.s32.totalorder %s59, %s60
    %p69 = scmp.eq.s32.totalorder %s14, 0
    %p70 = por %p68, %p69
    %p71 = scmp.ne.s32.totalorder %s59, %s60
    %p72 = scmp.eq.s32.totalorder %s15, 1
    %p73 = por %p71, %p72
    %p75 = scmp.ne.s32.totalorder %s60, %s74
    %p76 = scmp.eq.s32.totalorder %s15, 0
    %p77 = por %p75, %p76
    %s79 = sadd.s32 %s78, 1
    %p82 = scmp.eq.s32.totalorder %s9, 1
    %p83 = scmp.ne.s32.totalorder %s78, %s80
    %p84 = scmp.eq.s32.totalorder %s9, 0
    %p85 = por %p83, %p84
    %p86 = scmp.ne.s32.totalorder %s78, %s80
    %p87 = scmp.eq.s32.totalorder %s14, 1
    %p88 = por %p86, %p87
    %p89 = scmp.ne.s32.totalorder %s80, %s81
    %p90 = scmp.eq.s32.totalorder %s14, 0
    %p91 = por %p89, %p90
    %p92 = scmp.ne.s32.totalorder %s80, %s81
    %p93 = scmp.eq.s32.totalorder %s15, 1
    %p94 = por %p92, %p93
    %p96 = scmp.ne.s32.totalorder %s81, %s95
    %p97 = scmp.eq.s32.totalorder %s15, 0
    %p98 = por %p96, %p97
    %s99 = ssub.s32 %s16, %s28
    %s100 = ssub.s32 %s17, %s24
    %s101 = sor.u32 %s99, %s100
    %p102 = scmp.eq.s32.totalorder %s101, 0
    %s104 = sadd.s32 %s103, 1
    %s105 = scalar_select %p102, %s103, %s104
    %p108 = pneg %p102
    %p109 = scmp.eq.s32.totalorder %s9, 1
    %p110 = por %p108, %p109
    %p111 = scmp.ne.s32.totalorder %s103, %s106
    %p112 = scmp.eq.s32.totalorder %s9, 0
    %p113 = por %p111, %p112
    %p114 = scmp.ne.s32.totalorder %s103, %s106
    %p115 = scmp.eq.s32.totalorder %s14, 1
    %p116 = por %p114, %p115
    %p117 = scmp.ne.s32.totalorder %s106, %s107
    %p118 = scmp.eq.s32.totalorder %s14, 0
    %p119 = por %p117, %p118
    %p120 = scmp.ne.s32.totalorder %s106, %s107
    %p121 = scmp.eq.s32.totalorder %s15, 1
    %p122 = por %p120, %p121
    %p124 = scmp.ne.s32.totalorder %s107, %s123
    %p125 = scmp.eq.s32.totalorder %s15, 0
    %p126 = por %p124, %p125
    %p127 = scmp.le.s32.totalorder 1, %s9
    %p128 = scmp.lt.s32.totalorder %s9, 3
    %p129 = pnand %p127, %p128
    %p130 = pneg %p129
    // Predicated region
    $region9: #{tpu_custom_call.1} parent=5 // pred_check
      _
    $region10: #{tpu_custom_call.1} parent=5 // pred_check_branch
      %132 = sbr.rel (%p129) target = $region12
    $region11: #{tpu_custom_call.1} parent=5 // pred_region
      %s133 = ssub.s32 %s9, 1
      // Predicated region
      $region13: #{tpu_custom_call.1} parent=11 // pred_check
        %p134 = pneg %p70
      $region14: #{tpu_custom_call.1} parent=11 // pred_check_branch
        %136 = sbr.rel (%p134) target = $region16
      $region15: #{tpu_custom_call.1} parent=11 // pred_region
        _
      $region16: #{tpu_custom_call.1} parent=11 // pred_fallthru
        _
      // Predicated region
      $region17: #{tpu_custom_call.1} parent=11 // pred_check
        %p137 = pneg %p91
      $region18: #{tpu_custom_call.1} parent=11 // pred_check_branch
        %139 = sbr.rel (%p137) target = $region20
      $region19: #{tpu_custom_call.1} parent=11 // pred_region
        _
      $region20: #{tpu_custom_call.1} parent=11 // pred_fallthru
        _
    $region12: #{tpu_custom_call.1} parent=5 // pred_fallthru
      _
    %p140 = scmp.lt.s32.totalorder %s9, 2
    // Predicated region
    $region21: #{tpu_custom_call.1} parent=5 // pred_check
      %p141 = pneg %p140
    $region22: #{tpu_custom_call.1} parent=5 // pred_check_branch
      %143 = sbr.rel (%p141) target = $region24
    $region23: #{tpu_custom_call.1} parent=5 // pred_region
      // Predicated region
      $region25: #{tpu_custom_call.1} parent=23 // pred_check
        %p144 = pneg %p43
      $region26: #{tpu_custom_call.1} parent=23 // pred_check_branch
        %146 = sbr.rel (%p144) target = $region28
      $region27: #{tpu_custom_call.1} parent=23 // pred_region
        %p147 = scmp.lt.s32.totalorder %s16, 1
        %s148 = scalar_select %p147, %s16, 1
        %p149 = scmp.lt.s32.totalorder %s17, 0
        %s150 = scalar_select %p149, %s17, 0
        %s151 = smul.addr %s148, 4
        %s152 = sadd.s32 %s150, %s151
        %s153 = smul.addr %s152, 8
        %s154 = scalar_lea.vmem %s0, %s153
      $region28: #{tpu_custom_call.1} parent=23 // pred_fallthru
        _
    $region24: #{tpu_custom_call.1} parent=5 // pred_fallthru
      _
    %p155 = scmp.le.s32.totalorder 1, %s9
    %p156 = scmp.lt.s32.totalorder %s9, 3
    %p157 = pnand %p155, %p156
    %p158 = pneg %p157
    // Predicated region
    $region29: #{tpu_custom_call.1} parent=5 // pred_check
      _
    $region30: #{tpu_custom_call.1} parent=5 // pred_check_branch
      %160 = sbr.rel (%p157) target = $region32
    $region31: #{tpu_custom_call.1} parent=5 // pred_region
      %s161 = ssub.s32 %s9, 1
      %p162 = scmp.lt.s32.totalorder %s18, 1
      %s163 = scalar_select %p162, %s18, 1
      %p164 = scmp.lt.s32.totalorder %s19, 0
      %s165 = scalar_select %p164, %s19, 0
      %s166 = smul.addr %s163, 4
      %s167 = sadd.s32 %s165, %s166
      %s168 = smul.addr %s167, 8
      %s169 = scalar_lea.vmem %s0, %s168
      %p170 = pneg %p49
      %p171 = pneg %p46
      %p172 = pneg %p70
      %p173 = pneg %p67
      %p174 = pneg %p91
      %p175 = pneg %p88
      %p176 = pneg %p119
      %p177 = pneg %p116
      %p178 = scmp.lt.s32.totalorder %s18, 1
      %s179 = scalar_select %p178, %s18, 1
      %p180 = scmp.lt.s32.totalorder %s19, 0
      %s181 = scalar_select %p180, %s19, 0
      %s182 = smul.addr %s179, 4
      %s183 = sadd.s32 %s181, %s182
      %s184 = smul.addr %s183, 8
      %s185 = scalar_lea.vmem %s3, %s184
      %p186 = scmp.lt.s32.totalorder %s18, 1
      %s187 = scalar_select %p186, %s18, 1
      %p188 = scmp.lt.s32.totalorder %s19, 0
      %s189 = scalar_select %p188, %s19, 0
      %s190 = smul.addr %s187, 4
      %s191 = sadd.s32 %s189, %s190
      %s192 = smul.addr %s191, 8
      %s193 = scalar_lea.vmem %s0, %s192
      %p194 = scmp.lt.s32.totalorder %s18, 1
      %s195 = scalar_select %p194, %s18, 1
      %p196 = scmp.lt.s32.totalorder %s19, 0
      %s197 = scalar_select %p196, %s19, 0
      %s198 = smul.addr %s195, 4
      %s199 = sadd.s32 %s197, %s198
      %s200 = smul.addr %s199, 8
      %s201 = scalar_lea.vmem %s3, %s200
      %v202 = vld [vmem:[%s193] sm:$0xff]
      %v203 = vld [vmem:[%s193 + $0x8] sm:$0xff]
      %v204 = vld [vmem:[%s193 + $0x10] sm:$0xff]
      %v205 = vld [vmem:[%s193 + $0x18] sm:$0xff]
      %v206 = vadd.f32 %v202, %v203
      %v207 = vadd.f32 %v206, %v204
      %v208 = vadd.f32 %v207, %v205
      %v209 = vrot.slane %v208, 4
      %v210 = vadd.f32 %v208, %v209
      %v211 = vrot.slane %v210, 2
      %v212 = vadd.f32 %v210, %v211
      %v213 = vrot.slane %v212, 1
      %v214 = vadd.f32 %v212, %v213
      %v215 = vrcp.pop 32.0
      %v216 = vmul.f32 %v214, %v215
      %v217 = vmul.f32 %v202, %v202
      %v218 = vmul.f32 %v203, %v203
      %v219 = vmul.f32 %v204, %v204
      %v220 = vmul.f32 %v205, %v205
      %v221 = vadd.f32 %v217, %v218
      %v222 = vadd.f32 %v221, %v219
      %v223 = vadd.f32 %v222, %v220
      %v224 = vrot.slane %v223, 4
      %v225 = vadd.f32 %v223, %v224
      %v226 = vrot.slane %v225, 2
      %v227 = vadd.f32 %v225, %v226
      %v228 = vrot.slane %v227, 1
      %v229 = vadd.f32 %v227, %v228
      %v230 = vmul.f32 %v229, %v215
      %v231 = vmul.f32 %v216, %v216
      %v232 = vsub.f32 %v230, %v231
      %v233 = vmax.f32 %v232, 0.0
      %v234 = vadd.f32 %v233, 1e-05
      %v235 = vrsqrt.pop %v234
      %v236 = vsub.f32 %v202, %v216
      %v237 = vsub.f32 %v203, %v216
      %v238 = vsub.f32 %v204, %v216
      %v239 = vsub.f32 %v205, %v216
      %v240 = vmul.f32 %v236, %v235
      %v241 = vmul.f32 %v237, %v235
      %v242 = vmul.f32 %v238, %v235
      %v243 = vmul.f32 %v239, %v235
      %v244 = vld [vmem:[%s1] sm:$0xff]
      %v245 = vld [vmem:[%s1 + $0x8] sm:$0xff]
      %v246 = vld [vmem:[%s1 + $0x10] sm:$0xff]
      %v247 = vld [vmem:[%s1 + $0x18] sm:$0xff]
      %249 = vset.pattern.permute.xlu0 0
      %250 = vperm.xlu0 %249, %v244
      %v251 = vpop.permute.xlu0 %250
      %254 = vset.pattern.permute.xlu0 0
      %255 = vperm.xlu0 %254, %v245
      %v256 = vpop.permute.xlu0 %255
      %259 = vset.pattern.permute.xlu0 0
      %260 = vperm.xlu0 %259, %v246
      %v261 = vpop.permute.xlu0 %260
      %264 = vset.pattern.permute.xlu0 0
      %265 = vperm.xlu0 %264, %v247
      %v266 = vpop.permute.xlu0 %265
      %v268 = vmul.f32 %v240, %v251
      %v269 = vmul.f32 %v241, %v256
      %v270 = vmul.f32 %v242, %v261
      %v271 = vmul.f32 %v243, %v266
      %v272 = vld [vmem:[%s2] sm:$0xff]
      %v273 = vld [vmem:[%s2 + $0x8] sm:$0xff]
      %v274 = vld [vmem:[%s2 + $0x10] sm:$0xff]
      %v275 = vld [vmem:[%s2 + $0x18] sm:$0xff]
      %277 = vset.pattern.permute.xlu0 0
      %278 = vperm.xlu0 %277, %v272
      %v279 = vpop.permute.xlu0 %278
      %282 = vset.pattern.permute.xlu0 0
      %283 = vperm.xlu0 %282, %v273
      %v284 = vpop.permute.xlu0 %283
      %287 = vset.pattern.permute.xlu0 0
      %288 = vperm.xlu0 %287, %v274
      %v289 = vpop.permute.xlu0 %288
      %292 = vset.pattern.permute.xlu0 0
      %293 = vperm.xlu0 %292, %v275
      %v294 = vpop.permute.xlu0 %293
      %v296 = vadd.f32 %v268, %v279
      %v297 = vadd.f32 %v269, %v284
      %v298 = vadd.f32 %v270, %v289
      %v299 = vadd.f32 %v271, %v294
      %300 = vst [vmem:[%s201] sm:$0xff] %v296
      %301 = vst [vmem:[%s201 + $0x8] sm:$0xff] %v297
      %302 = vst [vmem:[%s201 + $0x10] sm:$0xff] %v298
      %303 = vst [vmem:[%s201 + $0x18] sm:$0xff] %v299
      %p304 = scmp.lt.s32.totalorder %s18, 1
      %s305 = scalar_select %p304, %s18, 1
      %p306 = scmp.lt.s32.totalorder %s19, 0
      %s307 = scalar_select %p306, %s19, 0
      %s308 = smul.addr %s305, 4
      %s309 = sadd.s32 %s307, %s308
      %s310 = smul.addr %s309, 8
      %s311 = scalar_lea.vmem %s3, %s310
      // Predicated region
      $region33: #{tpu_custom_call.1} parent=31 // pred_check
        %p312 = pneg %p116
      $region34: #{tpu_custom_call.1} parent=31 // pred_check_branch
        %314 = sbr.rel (%p312) target = $region36
      $region35: #{tpu_custom_call.1} parent=31 // pred_region
        _
      $region36: #{tpu_custom_call.1} parent=31 // pred_fallthru
        _
    $region32: #{tpu_custom_call.1} parent=5 // pred_fallthru
      _
    %p315 = scmp.le.s32.totalorder 2, %s9
    // Predicated region
    $region37: #{tpu_custom_call.1} parent=5 // pred_check
      %p316 = pneg %p315
    $region38: #{tpu_custom_call.1} parent=5 // pred_check_branch
      %318 = sbr.rel (%p316) target = $region40
    $region39: #{tpu_custom_call.1} parent=5 // pred_region
      %s319 = ssub.s32 %s9, 2
      // Predicated region
      $region41: #{tpu_custom_call.1} parent=39 // pred_check
        %p320 = pneg %p122
      $region42: #{tpu_custom_call.1} parent=39 // pred_check_branch
        %322 = sbr.rel (%p320) target = $region44
      $region43: #{tpu_custom_call.1} parent=39 // pred_region
        %p323 = scmp.lt.s32.totalorder %s20, 1
        %s324 = scalar_select %p323, %s20, 1
        %p325 = scmp.lt.s32.totalorder %s21, 0
        %s326 = scalar_select %p325, %s21, 0
        %s327 = smul.addr %s324, 4
        %s328 = sadd.s32 %s326, %s327
        %s329 = smul.addr %s328, 8
        %s330 = scalar_lea.vmem %s3, %s329
      $region44: #{tpu_custom_call.1} parent=39 // pred_fallthru
        _
    $region40: #{tpu_custom_call.1} parent=5 // pred_fallthru
      _
  $region6: #{tpu_custom_call.1} parent=0 // loop_footer
    %s13 = sadd.s32 1, %s9
  $region7: #{tpu_custom_call.1} parent=0 // loop_footer_branch
    %8 = sbr.rel target = $region3
  $region8: #{tpu_custom_call.1} parent=0 // loop_exit
    _

</llo_original>
